<compile_context>
chip_gen: v5e
topology: v5e:2x2
jax: 0.10.0
libtpu: 0.0.40
codegen_flags: <defaults>
</compile_context>

<pallas_src>
import functools

import numpy as np

import jax
import jax.numpy as jnp
from jax import lax
from jax.experimental import pallas as pl
from jax.experimental.pallas import tpu as pltpu


_NEG_BIG = -1.0e30            # finite "minus infinity" masking padded vocab columns
_MAX_TK_COLLAPSE = 2048       # collapse the K grid axis when Dp <= this
_VMEM_LIMIT = 48 * 1024 * 1024


def _round_up(x, m):
    return (x + m - 1) // m * m


def _pad2d(a, rows, cols, value=0):
    r, c = a.shape
    if r == rows and c == cols:
        return a
    return jnp.pad(a, ((0, rows - r), (0, cols - c)), constant_values=value)


def _pick_row_tile(n_rows, target=512, quantum=256):
    """Row tile: multiple of 8; prefer >=2 row blocks so v7x's 2 TCs both work."""
    nr = _round_up(n_rows, 8)
    if nr <= quantum:
        return nr
    if nr < 2 * quantum:
        return quantum
    half = (nr // 2) // quantum * quantum
    return max(quantum, min(target, half))


# ----------------------------------------------------------------------------
# Kernel 1: tiled logits projection  out[M,V] = x[M,D] @ W[D,V] + b[1,V]
#   nk==1 variant: no scratch, direct store (common case: D fits one tile).
#   nk>1  variant: grid (M/tm, V/tn, D/tk), f32 VMEM accumulator, bias on last k.
# ----------------------------------------------------------------------------
def _matmul_bias_kernel_nk1(x_ref, w_ref, b_ref, o_ref):
    o_ref[...] = (jnp.dot(x_ref[...], w_ref[...],
                          preferred_element_type=jnp.float32)
                  + b_ref[...]).astype(o_ref.dtype)


def _matmul_bias_kernel(x_ref, w_ref, b_ref, o_ref, acc_ref):
    k = pl.program_id(2)

    @pl.when(k == 0)
    def _():
        acc_ref[...] = jnp.zeros_like(acc_ref)

    acc_ref[...] += jnp.dot(x_ref[...], w_ref[...],
                            preferred_element_type=jnp.float32)

    @pl.when(k == pl.num_programs(2) - 1)
    def _():
        o_ref[...] = (acc_ref[...] + b_ref[...]).astype(o_ref.dtype)


def project_logits(x, w, b, *, tm=512, tn=1024, tk=512, out_dtype=jnp.bfloat16):
    """Logits = x @ W + b.  bf16 MXU inputs, f32 accumulation, bf16 output."""
    M, D = x.shape
    _, V = w.shape
    tm = min(tm, _round_up(M, 8))
    tn = min(tn, _round_up(V, 128))
    Dp0 = _round_up(D, 128)
    tk = Dp0 if Dp0 <= _MAX_TK_COLLAPSE else min(tk, Dp0)
    Mp, Vp, Dp = _round_up(M, tm), _round_up(V, tn), _round_up(D, tk)

    xp = _pad2d(x.astype(jnp.bfloat16), Mp, Dp)
    wp = _pad2d(w.astype(jnp.bfloat16), Dp, Vp)
    bp = _pad2d(b.reshape(1, V).astype(jnp.float32), 1, Vp)

    nk = Dp // tk
    if nk == 1:
        out = pl.pallas_call(
            _matmul_bias_kernel_nk1,
            out_shape=jax.ShapeDtypeStruct((Mp, Vp), out_dtype),
            grid_spec=pltpu.PrefetchScalarGridSpec(
                num_scalar_prefetch=0,
                grid=(Mp // tm, Vp // tn),
                in_specs=[
                    pl.BlockSpec((tm, Dp), lambda i, j: (i, 0)),
                    pl.BlockSpec((Dp, tn), lambda i, j: (0, j)),
                    pl.BlockSpec((1, tn), lambda i, j: (0, j)),
                ],
                out_specs=pl.BlockSpec((tm, tn), lambda i, j: (i, j)),
            ),
            compiler_params=pltpu.CompilerParams(
                dimension_semantics=("parallel", "parallel"),
                vmem_limit_bytes=_VMEM_LIMIT,
            ),
        )(xp, wp, bp)
    else:
        out = pl.pallas_call(
            _matmul_bias_kernel,
            out_shape=jax.ShapeDtypeStruct((Mp, Vp), out_dtype),
            grid_spec=pltpu.PrefetchScalarGridSpec(
                num_scalar_prefetch=0,
                grid=(Mp // tm, Vp // tn, nk),
                in_specs=[
                    pl.BlockSpec((tm, tk), lambda i, j, k: (i, k)),
                    pl.BlockSpec((tk, tn), lambda i, j, k: (k, j)),
                    pl.BlockSpec((1, tn), lambda i, j, k: (0, j)),
                ],
                out_specs=pl.BlockSpec((tm, tn), lambda i, j, k: (i, j)),
                scratch_shapes=[pltpu.VMEM((tm, tn), jnp.float32)],
            ),
            compiler_params=pltpu.CompilerParams(
                dimension_semantics=("parallel", "parallel", "arbitrary"),
                vmem_limit_bytes=_VMEM_LIMIT,
            ),
        )(xp, wp, bp)
    return out[:M, :V]


# ----------------------------------------------------------------------------
# Kernel 2: fused matmul + cross-entropy ("flash CE")
#   Per row block i, the V axis (j) is streamed with an online log-sum-exp and a
#   running label-logit.  Logits never leave VMEM; only per-row masked NLL [N,1]
#   is written to HBM.  nk==1 variant avoids the acc scratch entirely.
# ----------------------------------------------------------------------------
def _online_ce_update(logits, labels, j, m_ref, l_ref, ll_ref):
    """Single read of the logits tile feeds both the LSE update and label select."""
    tn = logits.shape[-1]
    m_old = m_ref[...]
    m_new = jnp.maximum(m_old, jnp.max(logits, axis=-1, keepdims=True))
    l_ref[...] = (jnp.exp(m_old - m_new) * l_ref[...]
                  + jnp.sum(jnp.exp(logits - m_new), axis=-1, keepdims=True))
    m_ref[...] = m_new
    # local 0..tn-1 iota vs label shifted into this tile (no full-tile j*tn add)
    # NOTE: labels outside [0, V) never match any tile and silently give ll = 0.
    col = lax.broadcasted_iota(jnp.int32, logits.shape, 1)
    hit = col == (labels - j * tn)
    ll_ref[...] += jnp.sum(jnp.where(hit, logits, 0.0), axis=-1, keepdims=True)


def _ce_finalize(labels, m_ref, l_ref, ll_ref, nll_ref, pad_id):
    lse = m_ref[...] + jnp.log(l_ref[...])
    valid = (labels != pad_id).astype(jnp.float32)
    nll_ref[...] = (lse - ll_ref[...]) * valid


def _flash_ce_kernel_nk1(h_ref, w_ref, b_ref, lab_ref, nll_ref,
                         m_ref, l_ref, ll_ref, *, pad_id):
    j = pl.program_id(1)
    nj = pl.num_programs(1)

    @pl.when(j == 0)
    def _():
        m_ref[...] = jnp.full_like(m_ref, -jnp.inf)
        l_ref[...] = jnp.zeros_like(l_ref)
        ll_ref[...] = jnp.zeros_like(ll_ref)

    logits = (jnp.dot(h_ref[...], w_ref[...],
                      preferred_element_type=jnp.float32) + b_ref[...])
    labels = lab_ref[...]
    _online_ce_update(logits, labels, j, m_ref, l_ref, ll_ref)

    @pl.when(j == nj - 1)
    def _():
        _ce_finalize(labels, m_ref, l_ref, ll_ref, nll_ref, pad_id)


def _flash_ce_kernel(h_ref, w_ref, b_ref, lab_ref, nll_ref,
                     acc_ref, m_ref, l_ref, ll_ref, *, pad_id):
    j = pl.program_id(1)
    k = pl.program_id(2)
    nj = pl.num_programs(1)
    nk = pl.num_programs(2)

    @pl.when(jnp.logical_and(j == 0, k == 0))
    def _():
        m_ref[...] = jnp.full_like(m_ref, -jnp.inf)
        l_ref[...] = jnp.zeros_like(l_ref)
        ll_ref[...] = jnp.zeros_like(ll_ref)

    @pl.when(k == 0)
    def _():
        acc_ref[...] = jnp.zeros_like(acc_ref)

    acc_ref[...] += jnp.dot(h_ref[...], w_ref[...],
                            preferred_element_type=jnp.float32)

    @pl.when(k == nk - 1)
    def _():
        logits = acc_ref[...] + b_ref[...]
        labels = lab_ref[...]
        _online_ce_update(logits, labels, j, m_ref, l_ref, ll_ref)

    @pl.when(jnp.logical_and(j == nj - 1, k == nk - 1))
    def _():
        _ce_finalize(lab_ref[...], m_ref, l_ref, ll_ref, nll_ref, pad_id)


def fused_ce_nll(h, w, b, labels, pad_id, *, tn=512, tk=512):
    """Per-row masked NLL of softmax(h @ W + b) vs labels (pad rows -> 0)."""
    N, D = h.shape
    _, V = w.shape
    tm = _pick_row_tile(N)                       # >=2 row blocks when possible
    tn = min(tn, _round_up(V, 128))
    Dp0 = _round_up(D, 128)
    tk = Dp0 if Dp0 <= _MAX_TK_COLLAPSE else min(tk, Dp0)
    Np, Vp, Dp = _round_up(N, tm), _round_up(V, tn), _round_up(D, tk)

    hp = _pad2d(h.astype(jnp.bfloat16), Np, Dp)                        # zero rows -> masked
    wp = _pad2d(w.astype(jnp.bfloat16), Dp, Vp)                        # zero cols/rows
    bp = _pad2d(b.reshape(1, V).astype(jnp.float32), 1, Vp, _NEG_BIG)  # padded cols ~ -inf
    lp = _pad2d(labels.reshape(N, 1).astype(jnp.int32), Np, 1, int(pad_id))

    nk = Dp // tk
    row_scr = [pltpu.VMEM((tm, 1), jnp.float32)] * 3    # running max / sum-exp / label logit
    if nk == 1:
        kernel = functools.partial(_flash_ce_kernel_nk1, pad_id=int(pad_id))
        nll = pl.pallas_call(
            kernel,
            out_shape=jax.ShapeDtypeStruct((Np, 1), jnp.float32),
            grid_spec=pltpu.PrefetchScalarGridSpec(
                num_scalar_prefetch=0,
                grid=(Np // tm, Vp // tn),
                in_specs=[
                    pl.BlockSpec((tm, Dp), lambda i, j: (i, 0)),   # constant over j: no re-DMA
                    pl.BlockSpec((Dp, tn), lambda i, j: (0, j)),
                    pl.BlockSpec((1, tn), lambda i, j: (0, j)),
                    pl.BlockSpec((tm, 1), lambda i, j: (i, 0)),
                ],
                out_specs=pl.BlockSpec((tm, 1), lambda i, j: (i, 0)),
                scratch_shapes=row_scr,
            ),
            compiler_params=pltpu.CompilerParams(
                dimension_semantics=("parallel", "arbitrary"),
                vmem_limit_bytes=_VMEM_LIMIT,
            ),
        )(hp, wp, bp, lp)
    else:
        kernel = functools.partial(_flash_ce_kernel, pad_id=int(pad_id))
        nll = pl.pallas_call(
            kernel,
            out_shape=jax.ShapeDtypeStruct((Np, 1), jnp.float32),
            grid_spec=pltpu.PrefetchScalarGridSpec(
                num_scalar_prefetch=0,
                grid=(Np // tm, Vp // tn, nk),
                in_specs=[
                    pl.BlockSpec((tm, tk), lambda i, j, k: (i, k)),
                    pl.BlockSpec((tk, tn), lambda i, j, k: (k, j)),
                    pl.BlockSpec((1, tn), lambda i, j, k: (0, j)),
                    pl.BlockSpec((tm, 1), lambda i, j, k: (i, 0)),
                ],
                out_specs=pl.BlockSpec((tm, 1), lambda i, j, k: (i, 0)),
                scratch_shapes=[pltpu.VMEM((tm, tn), jnp.float32)] + row_scr,
            ),
            compiler_params=pltpu.CompilerParams(
                dimension_semantics=("parallel", "arbitrary", "arbitrary"),
                vmem_limit_bytes=_VMEM_LIMIT,
            ),
        )(hp, wp, bp, lp)
    return nll[:N, 0]


# ----------------------------------------------------------------------------
# Surrogate MMT model (glue).  Stands in for the external HuggingFace model:
# token embedding + optional visual-feature context + pooled encoder context.
# TODO(synk): the full external mmt_model / vision_encoder / tokenizer / beam
# search stacks have no in-script equivalent; replaced by this deterministic
# surrogate.
# ----------------------------------------------------------------------------
def mmt_hidden(src_ids, tgt_ids, img_feats, params, use_image):
    emb = params["tok_emb"][src_ids]                          # [B, S, D]
    if use_image:
        emb = emb + (img_feats @ params["w_img"])[:, None, :]
    ctx = emb.mean(axis=1)                                    # [B, D]
    dec = params["tok_emb"][tgt_ids] + ctx[:, None, :]        # [B, L, D]
    return dec


def zerommt_forward(src_ids, tgt_ids, img_feats, params, cfg_value, pad_id,
                    output_loss=True):
    B, L = tgt_ids.shape
    D = params["tok_emb"].shape[1]
    V = params["w_out"].shape[1]

    # multimodal branch (image features active) / text-only branch (no visual features)
    h_mm = mmt_hidden(src_ids, tgt_ids, img_feats, params, use_image=True)
    if cfg_value is not None:
        h_txt = mmt_hidden(src_ids, tgt_ids, img_feats, params, use_image=False)
        # CFG mix in hidden space.  Exactly equals logits_txt + cfg*(logits_mm - logits_txt)
        # because the vocab projection is affine (shared head) and (1-cfg)+cfg = 1.
        # [B, L, D] is tiny, so plain JAX is the right tool here (no kernel needed).
        h_mix = h_txt + jnp.float32(cfg_value) * (h_mm - h_txt)
    else:
        h_mix = h_mm

    if not output_loss:
        logits = project_logits(h_mix.reshape(B * L, D),
                                params["w_out"], params["b_out"])
        return logits.reshape(B, L, V)

    # teacher-forced shift: logits[:, 1:-1] vs labels = tgt[:, 2:]
    # Slice on the tiny hidden states so the [M, V] logits never exist in HBM.
    h_sl = h_mix[:, 1:-1, :].reshape(-1, D)                   # [B*(L-2), D]
    labels = tgt_ids[:, 2:].reshape(-1)                       # [B*(L-2)]
    nll = fused_ce_nll(h_sl, params["w_out"], params["b_out"], labels, pad_id)
    valid = (labels != pad_id).astype(jnp.float32)
    # NOTE: torch CrossEntropyLoss(reduction='mean') returns NaN when every target
    # equals ignore_index; we return 0 in that degenerate case.
    return jnp.sum(nll) / jnp.maximum(jnp.sum(valid), 1.0)


# ----------------------------------------------------------------------------
# Plain-JAX reference (bf16-matched numerics) for a light correctness check.
# ----------------------------------------------------------------------------
def _reference(src_ids, tgt_ids, img_feats, params, cfg_value, pad_id):
    B, L = tgt_ids.shape
    D = params["tok_emb"].shape[1]
    h_mm = mmt_hidden(src_ids, tgt_ids, img_feats, params, use_image=True)
    h_txt = mmt_hidden(src_ids, tgt_ids, img_feats, params, use_image=False)
    h_mix = h_txt + jnp.float32(cfg_value) * (h_mm - h_txt)

    def proj(h2d):
        hb = h2d.astype(jnp.bfloat16).astype(jnp.float32)
        wb = params["w_out"].astype(jnp.bfloat16).astype(jnp.float32)
        return hb @ wb + params["b_out"]

    logits_full = proj(h_mix.reshape(B * L, D)).reshape(B, L, -1)

    h_sl = h_mix[:, 1:-1, :].reshape(-1, D)
    labels = tgt_ids[:, 2:].reshape(-1)
    lg = proj(h_sl)
    logp = jax.nn.log_softmax(lg, axis=-1)
    ll = jnp.take_along_axis(logp, labels[:, None], axis=-1)[:, 0]
    valid = (labels != pad_id).astype(jnp.float32)
    loss = jnp.sum(-ll * valid) / jnp.maximum(jnp.sum(valid), 1.0)
    return loss, logits_full


if __name__ == "__main__":
    key = jax.random.PRNGKey(0)
    k1, k2, k3, k4, k5, k6 = jax.random.split(key, 6)

    # Small shapes consistent with the module's forward semantics.
    B, S_src, T_tgt, D, V, IMG_DIM = 2, 8, 6, 32, 128, 16
    PAD_ID = 1      # ignore_index
    BOS_ID = 2      # prepended "2" token as in preprocess()
    CFG = 1.25

    params = {
        "tok_emb": 0.02 * jax.random.normal(k1, (V, D), jnp.float32),
        "w_img": 0.02 * jax.random.normal(k2, (IMG_DIM, D), jnp.float32),
        "w_out": 0.02 * jax.random.normal(k3, (D, V), jnp.float32),
        "b_out": jnp.zeros((V,), jnp.float32),
    }

    src_ids = jax.random.randint(k4, (B, S_src), 3, V, dtype=jnp.int32)
    tgt_tok = jax.random.randint(k5, (B, T_tgt), 3, V, dtype=jnp.int32)
    # emulate padding on the second sequence so ignore_index is exercised
    tgt_tok = tgt_tok.at[1, -1].set(PAD_ID)
    # prepend the "2" token column exactly as preprocess() does
    tgt_ids = jnp.concatenate(
        [jnp.full((B, 1), BOS_ID, dtype=jnp.int32), tgt_tok], axis=-1
    )                                                         # [B, 1 + T_tgt]
    img_feats = jax.random.normal(k6, (B, IMG_DIM), jnp.float32)

    # forward with CFG mixing + fused cross-entropy loss (output_loss=True path)
    loss = zerommt_forward(src_ids, tgt_ids, img_feats, params,
                           cfg_value=CFG, pad_id=PAD_ID, output_loss=True)
    jax.block_until_ready(loss)

    # logits-only path (output_loss=False) exercising the tiled projection kernel
    mixed_logits = zerommt_forward(src_ids, tgt_ids, img_feats, params,
                                   cfg_value=CFG, pad_id=PAD_ID,
                                   output_loss=False)
    jax.block_until_ready(mixed_logits)

    # light correctness check vs a bf16-matched plain-JAX reference
    ref_loss, ref_logits = _reference(src_ids, tgt_ids, img_feats, params,
                                      cfg_value=CFG, pad_id=PAD_ID)
    np.testing.assert_allclose(np.asarray(loss, np.float32),
                               np.asarray(ref_loss, np.float32),
                               rtol=1e-2, atol=1e-2)
    np.testing.assert_allclose(np.asarray(mixed_logits, np.float32),
                               np.asarray(ref_logits, np.float32),
                               rtol=5e-2, atol=5e-3)

    print("KERNEL_OK")
</pallas_src>

<mosaic_0001>
module attributes {stable_mosaic.version = 11 : i64} {
  func.func @_flash_ce_kernel_nk1(%arg0: i32, %arg1: i32, %arg2: memref<16x128xbf16, #tpu.memory_space<vmem>>, %arg3: memref<128x128xbf16, #tpu.memory_space<vmem>>, %arg4: memref<1x128xf32, #tpu.memory_space<vmem>>, %arg5: memref<16x1xi32, #tpu.memory_space<vmem>>, %arg6: memref<16x1xf32, #tpu.memory_space<vmem>>, %arg7: memref<16x1xf32, #tpu.memory_space<vmem>>, %arg8: memref<16x1xf32, #tpu.memory_space<vmem>>, %arg9: memref<16x1xf32, #tpu.memory_space<vmem>>) attributes {dimension_semantics = [#tpu.dimension_semantics<parallel>, #tpu.dimension_semantics<arbitrary>], iteration_bounds = array<i64: 1, 1>, scalar_prefetch = 0 : i64, scratch_operands = 3 : i64, tpu.core_type = #tpu.core_type<tc>, window_params = [{transform_indices = @transform_0, window_bounds = array<i64: 16, 128>}, {transform_indices = @transform_1, window_bounds = array<i64: 128, 128>}, {transform_indices = @transform_2, window_bounds = array<i64: 1, 128>}, {transform_indices = @transform_3, window_bounds = array<i64: 16, 1>}, {transform_indices = @transform_4, window_bounds = array<i64: 16, 1>}]} {
    %c0_i32 = arith.constant 0 : i32
    %0 = arith.cmpi eq, %arg1, %c0_i32 : i32
    %1 = arith.extui %0 : i1 to i32
    %c0_i32_0 = arith.constant 0 : i32
    %2 = arith.cmpi ne, %1, %c0_i32_0 : i32
    scf.if %2 {
      %cst_26 = arith.constant 0xFF800000 : f32
      %42 = vector.broadcast %cst_26 : f32 to vector<16x1xf32>
      %c0_27 = arith.constant 0 : index
      %c0_28 = arith.constant 0 : index
      %43 = vector.load %arg7[%c0_27, %c0_28] : memref<16x1xf32, #tpu.memory_space<vmem>>, vector<16x1xf32>
      tpu.vector_store %arg7[%c0_27, %c0_28], %42 {strides = array<i32>} : memref<16x1xf32, #tpu.memory_space<vmem>>, vector<16x1xf32>,
      %cst_29 = arith.constant 0.000000e+00 : f32
      %44 = vector.broadcast %cst_29 : f32 to vector<16x1xf32>
      %c0_30 = arith.constant 0 : index
      %c0_31 = arith.constant 0 : index
      %45 = vector.load %arg8[%c0_30, %c0_31] : memref<16x1xf32, #tpu.memory_space<vmem>>, vector<16x1xf32>
      tpu.vector_store %arg8[%c0_30, %c0_31], %44 {strides = array<i32>} : memref<16x1xf32, #tpu.memory_space<vmem>>, vector<16x1xf32>,
      %cst_32 = arith.constant 0.000000e+00 : f32
      %46 = vector.broadcast %cst_32 : f32 to vector<16x1xf32>
      %c0_33 = arith.constant 0 : index
      %c0_34 = arith.constant 0 : index
      %47 = vector.load %arg9[%c0_33, %c0_34] : memref<16x1xf32, #tpu.memory_space<vmem>>, vector<16x1xf32>
      tpu.vector_store %arg9[%c0_33, %c0_34], %46 {strides = array<i32>} : memref<16x1xf32, #tpu.memory_space<vmem>>, vector<16x1xf32>,
    } else {
    }
    %c0 = arith.constant 0 : index
    %c0_1 = arith.constant 0 : index
    %3 = vector.load %arg2[%c0, %c0_1] : memref<16x128xbf16, #tpu.memory_space<vmem>>, vector<16x128xbf16>
    %c0_2 = arith.constant 0 : index
    %c0_3 = arith.constant 0 : index
    %4 = vector.load %arg3[%c0_2, %c0_3] : memref<128x128xbf16, #tpu.memory_space<vmem>>, vector<128x128xbf16>
    %cst = arith.constant dense<0.000000e+00> : vector<16x128xf32>
    %5 = tpu.matmul %3, %4, %cst {dimension_numbers = #tpu.dot_dimension_numbers<[1], [0], [0], [1], [0, 0, 1, 1], [], []>} : vector<16x128xbf16>, vector<128x128xbf16>, vector<16x128xf32> -> vector<16x128xf32>
    %c0_4 = arith.constant 0 : index
    %c0_5 = arith.constant 0 : index
    %6 = vector.load %arg4[%c0_4, %c0_5] : memref<1x128xf32, #tpu.memory_space<vmem>>, vector<1x128xf32>
    %7 = vector.broadcast %6 : vector<1x128xf32> to vector<16x128xf32>
    %8 = arith.addf %5, %7 : vector<16x128xf32>
    %c0_6 = arith.constant 0 : index
    %c0_7 = arith.constant 0 : index
    %9 = vector.load %arg5[%c0_6, %c0_7] : memref<16x1xi32, #tpu.memory_space<vmem>>, vector<16x1xi32>
    %c0_8 = arith.constant 0 : index
    %c0_9 = arith.constant 0 : index
    %10 = vector.load %arg7[%c0_8, %c0_9] : memref<16x1xf32, #tpu.memory_space<vmem>>, vector<16x1xf32>
    %cst_10 = arith.constant dense<0xFF800000> : vector<16xf32>
    %11 = vector.multi_reduction <maximumf>, %8, %cst_10 [1] : vector<16x128xf32> to vector<16xf32>
    %12 = vector.shape_cast %11 : vector<16xf32> to vector<16x1xf32>
    %13 = arith.maximumf %10, %12 : vector<16x1xf32>
    %14 = arith.subf %10, %13 : vector<16x1xf32>
    %15 = math.exp %14 : vector<16x1xf32>
    %c0_11 = arith.constant 0 : index
    %c0_12 = arith.constant 0 : index
    %16 = vector.load %arg8[%c0_11, %c0_12] : memref<16x1xf32, #tpu.memory_space<vmem>>, vector<16x1xf32>
    %17 = arith.mulf %15, %16 : vector<16x1xf32>
    %18 = vector.broadcast %13 : vector<16x1xf32> to vector<16x128xf32>
    %19 = arith.subf %8, %18 : vector<16x128xf32>
    %20 = math.exp %19 : vector<16x128xf32>
    %cst_13 = arith.constant dense<0.000000e+00> : vector<16xf32>
    %21 = vector.multi_reduction <add>, %20, %cst_13 [1] : vector<16x128xf32> to vector<16xf32>
    %22 = vector.shape_cast %21 : vector<16xf32> to vector<16x1xf32>
    %23 = arith.addf %17, %22 : vector<16x1xf32>
    %c0_14 = arith.constant 0 : index
    %c0_15 = arith.constant 0 : index
    %24 = vector.load %arg8[%c0_14, %c0_15] : memref<16x1xf32, #tpu.memory_space<vmem>>, vector<16x1xf32>
    tpu.vector_store %arg8[%c0_14, %c0_15], %23 {strides = array<i32>} : memref<16x1xf32, #tpu.memory_space<vmem>>, vector<16x1xf32>,
    %c0_16 = arith.constant 0 : index
    %c0_17 = arith.constant 0 : index
    %25 = vector.load %arg7[%c0_16, %c0_17] : memref<16x1xf32, #tpu.memory_space<vmem>>, vector<16x1xf32>
    tpu.vector_store %arg7[%c0_16, %c0_17], %13 {strides = array<i32>} : memref<16x1xf32, #tpu.memory_space<vmem>>, vector<16x1xf32>,
    %26 = tpu.iota {dimensions = array<i32: 1>} : vector<16x128xi32>
    %c128_i32 = arith.constant 128 : i32
    %27 = arith.muli %arg1, %c128_i32 : i32
    %28 = vector.broadcast %27 : i32 to vector<16x1xi32>
    %29 = arith.subi %9, %28 : vector<16x1xi32>
    %30 = vector.broadcast %29 : vector<16x1xi32> to vector<16x128xi32>
    %31 = arith.cmpi eq, %26, %30 : vector<16x128xi32>
    %c0_18 = arith.constant 0 : index
    %c0_19 = arith.constant 0 : index
    %32 = vector.load %arg9[%c0_18, %c0_19] : memref<16x1xf32, #tpu.memory_space<vmem>>, vector<16x1xf32>
    %cst_20 = arith.constant 0.000000e+00 : f32
    %33 = vector.broadcast %cst_20 : f32 to vector<16x128xf32>
    %34 = arith.select %31, %8, %33 : vector<16x128xi1>, vector<16x128xf32>
    %cst_21 = arith.constant dense<0.000000e+00> : vector<16xf32>
    %35 = vector.multi_reduction <add>, %34, %cst_21 [1] : vector<16x128xf32> to vector<16xf32>
    %36 = vector.shape_cast %35 : vector<16xf32> to vector<16x1xf32>
    %37 = arith.addf %32, %36 : vector<16x1xf32>
    %c0_22 = arith.constant 0 : index
    %c0_23 = arith.constant 0 : index
    %38 = vector.load %arg9[%c0_22, %c0_23] : memref<16x1xf32, #tpu.memory_space<vmem>>, vector<16x1xf32>
    tpu.vector_store %arg9[%c0_22, %c0_23], %37 {strides = array<i32>} : memref<16x1xf32, #tpu.memory_space<vmem>>, vector<16x1xf32>,
    %c0_i32_24 = arith.constant 0 : i32
    %39 = arith.cmpi eq, %arg1, %c0_i32_24 : i32
    %40 = arith.extui %39 : i1 to i32
    %c0_i32_25 = arith.constant 0 : i32
    %41 = arith.cmpi ne, %40, %c0_i32_25 : i32
    scf.if %41 {
      %c0_26 = arith.constant 0 : index
      %c0_27 = arith.constant 0 : index
      %42 = vector.load %arg7[%c0_26, %c0_27] : memref<16x1xf32, #tpu.memory_space<vmem>>, vector<16x1xf32>
      %c0_28 = arith.constant 0 : index
      %c0_29 = arith.constant 0 : index
      %43 = vector.load %arg8[%c0_28, %c0_29] : memref<16x1xf32, #tpu.memory_space<vmem>>, vector<16x1xf32>
      %44 = math.log %43 : vector<16x1xf32>
      %45 = arith.addf %42, %44 : vector<16x1xf32>
      %c1_i32 = arith.constant 1 : i32
      %46 = vector.broadcast %c1_i32 : i32 to vector<16x1xi32>
      %47 = arith.cmpi ne, %9, %46 : vector<16x1xi32>
      %48 = arith.extui %47 : vector<16x1xi1> to vector<16x1xi32>
      %49 = arith.sitofp %48 : vector<16x1xi32> to vector<16x1xf32>
      %c0_30 = arith.constant 0 : index
      %c0_31 = arith.constant 0 : index
      %50 = vector.load %arg9[%c0_30, %c0_31] : memref<16x1xf32, #tpu.memory_space<vmem>>, vector<16x1xf32>
      %51 = arith.subf %45, %50 : vector<16x1xf32>
      %52 = arith.mulf %51, %49 : vector<16x1xf32>
      %c0_32 = arith.constant 0 : index
      %c0_33 = arith.constant 0 : index
      %53 = vector.load %arg6[%c0_32, %c0_33] : memref<16x1xf32, #tpu.memory_space<vmem>>, vector<16x1xf32>
      tpu.vector_store %arg6[%c0_32, %c0_33], %52 {strides = array<i32>} : memref<16x1xf32, #tpu.memory_space<vmem>>, vector<16x1xf32>,
    } else {
    }
    return
  }
  func.func @transform_0(%arg0: i32, %arg1: i32) -> (i32, i32) {
    %c0_i32 = arith.constant 0 : i32
    %c0_i32_0 = arith.constant 0 : i32
    return %arg0, %c0_i32 : i32, i32
  }
  func.func @transform_1(%arg0: i32, %arg1: i32) -> (i32, i32) {
    %c0_i32 = arith.constant 0 : i32
    %c0_i32_0 = arith.constant 0 : i32
    return %c0_i32, %arg1 : i32, i32
  }
  func.func @transform_2(%arg0: i32, %arg1: i32) -> (i32, i32) {
    %c0_i32 = arith.constant 0 : i32
    %c0_i32_0 = arith.constant 0 : i32
    return %c0_i32, %arg1 : i32, i32
  }
  func.func @transform_3(%arg0: i32, %arg1: i32) -> (i32, i32) {
    %c0_i32 = arith.constant 0 : i32
    %c0_i32_0 = arith.constant 0 : i32
    return %arg0, %c0_i32 : i32, i32
  }
  func.func @transform_4(%arg0: i32, %arg1: i32) -> (i32, i32) {
    %c0_i32 = arith.constant 0 : i32
    %c0_i32_0 = arith.constant 0 : i32
    return %arg0, %c0_i32 : i32, i32
  }
}

</mosaic_0001>

<llo_original>
// kernel: tpu_custom_call.1
$region0: #{tpu_custom_call.1}
  #allocation0 [shape = 'u32[]', space=smem, size = 0x4, offset = 0x4, fixed_abs, tag = 'smem constant byte address 0x4 - core index']
  #allocation1 [shape = 'u32[72,128]{1,0:T(1,128)}', space=vmem, size = 0x9000, scoped, tag = 'internal scratch']
  #allocation2 [shape = 'f32[16,1]{1,0:T(8,128)}', space=vmem, size = 0x2000, scoped, tag = 'scratch operand']
  #allocation3 [shape = 'f32[16,1]{1,0:T(8,128)}', space=vmem, size = 0x2000, scoped, tag = 'scratch operand']
  #allocation4 [shape = 'f32[16,1]{1,0:T(8,128)}', space=vmem, size = 0x2000, scoped, tag = 'scratch operand']
  %s0 = inlined_call_operand.vmem [shape: bf16[16,128], index: 0, kind: input, shape index: {}]
  %s1 = inlined_call_operand.hbm [shape: bf16[128,128], index: 1, kind: input, shape index: {}]
  %s2 = inlined_call_operand.vmem [shape: f32[1,128], index: 2, kind: input, shape index: {}]
  %s3 = inlined_call_operand.vmem [shape: s32[16,1], index: 3, kind: input, shape index: {}]
  %s4 = inlined_call_operand.vmem [shape: f32[16,1], index: 4, kind: output, shape index: {}]
  %s5 = sld [smem:[#allocation0]]
  $region38: #{tpu_custom_call.1} parent=0
    _
  %s7 = ssub.s32 1, %s5
  %s8 = scalar_select 0, %s7, %s5
  $region1: #{tpu_custom_call.1} parent=0
    #allocation5 [shape = 'u8[32768]{0}', space=vmem, size = 0x8000, scoped, tag = 'input window, operand 1, single buffered']
    #allocation6 [shape = 's32[1]{0}', space=sflag, size = 0x4, scoped, tag = 'scoped memory for tpu_custom_call.1']
    %9 = vsyncpa [#allocation6], 0
    // Predicated region
    $region2: #{tpu_custom_call.1} parent=1 // pred_check
      _
    $region3: #{tpu_custom_call.1} parent=1 // pred_check_branch
      %11 = sbr.rel (0) target = $region5
    $region4: #{tpu_custom_call.1} parent=1 // pred_region
      _
    $region5: #{tpu_custom_call.1} parent=1 // pred_fallthru
      _
    // Predicated region
    $region6: #{tpu_custom_call.1} parent=1 // pred_check
      _
    $region7: #{tpu_custom_call.1} parent=1 // pred_check_branch
      %13 = sbr.rel (0) target = $region9
    $region8: #{tpu_custom_call.1} parent=1 // pred_region
      %15 = vsyncadd [#allocation6], 0
      %s16 = sshll.u32 %s1, 4
      %s17 = int_to_ptr.hbm [resolvable:$true] %s16
      %s18 = sshll.u32 [#allocation5], 4
      %s19 = int_to_ptr.vmem [resolvable:$true] %s18
      %24 = dma.hbm_to_vmem [thread:$0]  %s17, 1024, %s19, [#allocation6], 64, 64, 4
    $region9: #{tpu_custom_call.1} parent=1 // pred_fallthru
      _
    // Predicated region
    $region10: #{tpu_custom_call.1} parent=1 // pred_check
      _
    $region11: #{tpu_custom_call.1} parent=1 // pred_check_branch
      %26 = sbr.rel (0) target = $region13
    $region12: #{tpu_custom_call.1} parent=1 // pred_region
      _
    $region13: #{tpu_custom_call.1} parent=1 // pred_fallthru
      _
    // Predicated region
    $region14: #{tpu_custom_call.1} parent=1 // pred_check
      _
    $region15: #{tpu_custom_call.1} parent=1 // pred_check_branch
      %28 = sbr.rel (0) target = $region17
    $region16: #{tpu_custom_call.1} parent=1 // pred_region
      _
    $region17: #{tpu_custom_call.1} parent=1 // pred_fallthru
      _
    // Predicated region
    $region18: #{tpu_custom_call.1} parent=1 // pred_check
      _
    $region19: #{tpu_custom_call.1} parent=1 // pred_check_branch
      %30 = sbr.rel (0) target = $region21
    $region20: #{tpu_custom_call.1} parent=1 // pred_region
      %32 = dma.done [#allocation6], 1024
    $region21: #{tpu_custom_call.1} parent=1 // pred_fallthru
      _
    %p33 = scmp.eq.s32.totalorder 0, 0
    // Predicated region
    $region22: #{tpu_custom_call.1} parent=1 // pred_check
      %p34 = pneg %p33
    $region23: #{tpu_custom_call.1} parent=1 // pred_check_branch
      %36 = sbr.rel (%p34) target = $region25
    $region24: #{tpu_custom_call.1} parent=1 // pred_region
      %vm37 = vcmask 7168
      %38 = vst.msk [vmem:[#allocation2] sm:$0xff] %vm37, -inf
      %39 = vst.msk [vmem:[#allocation2 + $0x8] sm:$0xff] %vm37, -inf
      %40 = vst.msk [vmem:[#allocation3] sm:$0xff] %vm37, 0.0
      %41 = vst.msk [vmem:[#allocation3 + $0x8] sm:$0xff] %vm37, 0.0
      %42 = vst.msk [vmem:[#allocation4] sm:$0xff] %vm37, 0.0
      %43 = vst.msk [vmem:[#allocation4 + $0x8] sm:$0xff] %vm37, 0.0
    $region25: #{tpu_custom_call.1} parent=1 // pred_fallthru
      _
    %v44 = vld [vmem:[%s0] sm:$0xf]
    %v45 = vld [vmem:[%s0 + $0x4] sm:$0xf]
    %v46 = vld [vmem:[#allocation5] sm:$0xf]
    %v47 = vld [vmem:[#allocation5 + $0x4] sm:$0xf]
    %v48 = vld [vmem:[#allocation5 + $0x8] sm:$0xf]
    %v49 = vld [vmem:[#allocation5 + $0xc] sm:$0xf]
    %v50 = vld [vmem:[#allocation5 + $0x10] sm:$0xf]
    %v51 = vld [vmem:[#allocation5 + $0x14] sm:$0xf]
    %v52 = vld [vmem:[#allocation5 + $0x18] sm:$0xf]
    %v53 = vld [vmem:[#allocation5 + $0x1c] sm:$0xf]
    %v54 = vld [vmem:[#allocation5 + $0x20] sm:$0xf]
    %v55 = vld [vmem:[#allocation5 + $0x24] sm:$0xf]
    %v56 = vld [vmem:[#allocation5 + $0x28] sm:$0xf]
    %v57 = vld [vmem:[#allocation5 + $0x2c] sm:$0xf]
    %v58 = vld [vmem:[#allocation5 + $0x30] sm:$0xf]
    %v59 = vld [vmem:[#allocation5 + $0x34] sm:$0xf]
    %v60 = vld [vmem:[#allocation5 + $0x38] sm:$0xf]
    %v61 = vld [vmem:[#allocation5 + $0x3c] sm:$0xf]
    %v62 = vld [vmem:[%s2] sm:$0x1]
    %v64 = vperm.slane %v62, 0
    %v68 = vunpack.c.l.b16 %v44
    %v69 = vunpack.c.l.b16 %v45
    %v70 = vpack.c.b16 %v69, %v68
    %v88 = vunpack.c.l.b16 %v46
    %v89 = vunpack.c.l.b16 %v47
    %v90 = vunpack.c.l.b16 %v48
    %v91 = vunpack.c.l.b16 %v49
    %v92 = vunpack.c.l.b16 %v50
    %v93 = vunpack.c.l.b16 %v51
    %v94 = vunpack.c.l.b16 %v52
    %v95 = vunpack.c.l.b16 %v53
    %v96 = vunpack.c.l.b16 %v54
    %v97 = vunpack.c.l.b16 %v55
    %v98 = vunpack.c.l.b16 %v56
    %v99 = vunpack.c.l.b16 %v57
    %v100 = vunpack.c.l.b16 %v58
    %v101 = vunpack.c.l.b16 %v59
    %v102 = vunpack.c.l.b16 %v60
    %v103 = vunpack.c.l.b16 %v61
    %v104 = vpack.c.b16 %v89, %v88
    %v105 = vpack.c.b16 %v91, %v90
    %v106 = vpack.c.b16 %v93, %v92
    %v107 = vpack.c.b16 %v95, %v94
    %v108 = vpack.c.b16 %v97, %v96
    %v109 = vpack.c.b16 %v99, %v98
    %v110 = vpack.c.b16 %v101, %v100
    %v111 = vpack.c.b16 %v103, %v102
    %120 = vmatpush.bf16.msra.mxu0 %v111
    %121 = vmatpush.bf16.msra.mxu0 %v110
    %122 = vmatpush.bf16.msra.mxu0 %v109
    %123 = vmatpush.bf16.msra.mxu0 %v108
    %124 = vmatpush.bf16.msra.mxu0 %v107
    %125 = vmatpush.bf16.msra.mxu0 %v106
    %126 = vmatpush.bf16.msra.mxu0 %v105
    %127 = vmatpush.bf16.msra.mxu0 %v104
    %128 = vmatmul.bf16.gmra.mxu0 %v70
    %v129 = vpop.f32.mrf.mxu0
    %v130 = vadd.f32 %v64, %v129
    %v131 = vpop.f32.mrf.mxu0
    %v132 = vadd.f32 %v64, %v131
    %133 = vdwg.mxu0
    %v134 = vld [vmem:[%s3] sm:$0xff]
    %v135 = vld [vmem:[%s3 + $0x8] sm:$0xff]
    %v136 = vld [vmem:[#allocation2] sm:$0xff]
    %v137 = vld [vmem:[#allocation2 + $0x8] sm:$0xff]
    %138 = vmax.xlane.f32.xlu0 %v130
    %v139 = vpop.xlane.xlu0 %138
    %140 = vmax.xlane.f32.xlu0 %v132
    %v141 = vpop.xlane.xlu0 %140
    %v142 = vmax.f32 %v136, %v139
    %v143 = vmax.f32 %v137, %v141
    %v144 = vsub.f32 %v136, %v142
    %v145 = vsub.f32 %v137, %v143
    %v146 = vmul.f32 %v144, 1.442695
    %v147 = vpow.pop %v146
    %v148 = vmul.f32 %v145, 1.442695
    %v149 = vpow.pop %v148
    %v150 = vld [vmem:[#allocation3] sm:$0xff]
    %v151 = vld [vmem:[#allocation3 + $0x8] sm:$0xff]
    %v152 = vmul.f32 %v147, %v150
    %v153 = vmul.f32 %v149, %v151
    %155 = vset.pattern.permute.xlu0 0
    %156 = vperm.xlu0 %155, %v142
    %v157 = vpop.permute.xlu0 %156
    %160 = vset.pattern.permute.xlu0 0
    %161 = vperm.xlu0 %160, %v143
    %v162 = vpop.permute.xlu0 %161
    %v164 = vsub.f32 %v130, %v157
    %v165 = vsub.f32 %v132, %v162
    %v166 = vmul.f32 %v164, 1.442695
    %v167 = vpow.pop %v166
    %v168 = vmul.f32 %v165, 1.442695
    %v169 = vpow.pop %v168
    %170 = vadd.xlane.f32.xlu0 %v167
    %v171 = vpop.xlane.xlu0 %170
    %172 = vadd.xlane.f32.xlu0 %v169
    %v173 = vpop.xlane.xlu0 %172
    %v174 = vadd.f32 %v152, %v171
    %v175 = vadd.f32 %v153, %v173
    %vm176 = vcmask 7168
    %177 = vst.msk [vmem:[#allocation3] sm:$0xff] %vm176, %v174
    %178 = vst.msk [vmem:[#allocation3 + $0x8] sm:$0xff] %vm176, %v175
    %179 = vst.msk [vmem:[#allocation2] sm:$0xff] %vm176, %v142
    %180 = vst.msk [vmem:[#allocation2 + $0x8] sm:$0xff] %vm176, %v143
    %v181 = vlaneseq
    %v182 = vand.u32 %v181, 127
    %s183 = smul.u32 0, 128
    %v184 = vstv %s183
    %v185 = vsub.s32 %v134, %v184
    %v186 = vsub.s32 %v135, %v184
    %187 = vset.pattern.permute.xlu0 0
    %188 = vperm.xlu0 %187, %v185
    %v189 = vpop.permute.xlu0 %188
    %190 = vset.pattern.permute.xlu0 0
    %191 = vperm.xlu0 %190, %v186
    %v192 = vpop.permute.xlu0 %191
    %vm193 = vcmp.eq.s32.totalorder %v182, %v189
    %vm194 = vcmp.eq.s32.totalorder %v182, %v192
    %v195 = vld [vmem:[#allocation4] sm:$0xff]
    %v196 = vld [vmem:[#allocation4 + $0x8] sm:$0xff]
    %v197 = vsel %vm193, %v130, 0.0
    %v198 = vsel %vm194, %v132, 0.0
    %199 = vadd.xlane.f32.xlu0 %v197
    %v200 = vpop.xlane.xlu0 %199
    %201 = vadd.xlane.f32.xlu0 %v198
    %v202 = vpop.xlane.xlu0 %201
    %v203 = vadd.f32 %v195, %v200
    %v204 = vadd.f32 %v196, %v202
    %205 = vst.msk [vmem:[#allocation4] sm:$0xff] %vm176, %v203
    %206 = vst.msk [vmem:[#allocation4 + $0x8] sm:$0xff] %vm176, %v204
    // Predicated region
    $region26: #{tpu_custom_call.1} parent=1 // pred_check
      %p207 = pneg %p33
    $region27: #{tpu_custom_call.1} parent=1 // pred_check_branch
      %209 = sbr.rel (%p207) target = $region29
    $region28: #{tpu_custom_call.1} parent=1 // pred_region
      %v210 = vld [vmem:[#allocation2] sm:$0xff]
      %v211 = vld [vmem:[#allocation2 + $0x8] sm:$0xff]
      %v212 = vld [vmem:[#allocation3] sm:$0xff]
      %v213 = vld [vmem:[#allocation3 + $0x8] sm:$0xff]
      %v214 = vlog2.pop %v212
      %v215 = vmul.f32 %v214, 0.6931472
      %v216 = vlog2.pop %v213
      %v217 = vmul.f32 %v216, 0.6931472
      %v218 = vadd.f32 %v210, %v215
      %v219 = vadd.f32 %v211, %v217
      %vm220 = vcmp.ne.s32.totalorder %v134, 1
      %vm221 = vcmp.ne.s32.totalorder %v135, 1
      %v222 = vsel %vm220, 1, 0
      %v223 = vsel %vm221, 1, 0
      %v224 = vcvt.s32.f32 %v222
      %v225 = vcvt.s32.f32 %v223
      %v226 = vld [vmem:[#allocation4] sm:$0xff]
      %v227 = vld [vmem:[#allocation4 + $0x8] sm:$0xff]
      %v228 = vsub.f32 %v218, %v226
      %v229 = vsub.f32 %v219, %v227
      %v230 = vmul.f32 %v228, %v224
      %v231 = vmul.f32 %v229, %v225
      %232 = vst.msk [vmem:[%s4] sm:$0xff] %vm176, %v230
      %233 = vst.msk [vmem:[%s4 + $0x8] sm:$0xff] %vm176, %v231
    $region29: #{tpu_custom_call.1} parent=1 // pred_fallthru
      _
    // Predicated region
    $region30: #{tpu_custom_call.1} parent=1 // pred_check
      _
    $region31: #{tpu_custom_call.1} parent=1 // pred_check_branch
      %235 = sbr.rel (0) target = $region33
    $region32: #{tpu_custom_call.1} parent=1 // pred_region
      _
    $region33: #{tpu_custom_call.1} parent=1 // pred_fallthru
      _
    // Predicated region
    $region34: #{tpu_custom_call.1} parent=1 // pred_check
      _
    $region35: #{tpu_custom_call.1} parent=1 // pred_check_branch
      %237 = sbr.rel (0) target = $region37
    $region36: #{tpu_custom_call.1} parent=1 // pred_region
      _
    $region37: #{tpu_custom_call.1} parent=1 // pred_fallthru
      _
    %238 = vsyncpa [#allocation6], 1

</llo_original>
